<compile_context>
chip_gen: v7x
topology: tpu7x:2x2x1
jax: 0.10.0
libtpu: 0.0.40
codegen_flags: <defaults>
</compile_context>

<pallas_src>
import functools

import jax
import jax.numpy as jnp
from jax.experimental import pallas as pl
from jax.experimental.pallas import tpu as pltpu


_MIN_BLOCK_BYTES = 1 << 20      # never shrink blocks below ~1 MiB for grid steps
_MIN_GRID_STEPS = 6             # >= 3 steps per TensorCore on v7x megacore


def _round_up(x, m):
    return -(-x // m) * m


def _tpu_vmem_capacity_bytes():
    """Physical VMEM per TensorCore; conservative default if query fails."""
    try:
        info = pltpu.get_tpu_info()
        cap = getattr(info, "vmem_capacity_bytes", None)
        if cap:
            return int(cap)
    except Exception:
        pass
    return 64 << 20   # assume v7x-class (64 MiB) if unknown — safe everywhere


def _vmem_budget():
    """Scoped-VMEM budget we allow ourselves (leave headroom for the compiler)."""
    cap = _tpu_vmem_capacity_bytes()
    return int(max(min(cap - (24 << 20), 96 << 20), 24 << 20))
    # v7x (64 MiB)  -> 40 MiB budget; v5e/v6e (128 MiB) -> 96 MiB budget.


def _block_target_bytes():
    """Target f32 bytes per (rows, L) block: 2 in-bufs + 2 out-bufs + ~3x f32
    temporaries + slack must fit the budget."""
    budget = _vmem_budget()
    return int(min(max((budget - (8 << 20)) // 7, 2 << 20), 8 << 20))


def _vmem_limit(need_bytes):
    budget = _vmem_budget()
    return int(min(max(need_bytes + (4 << 20), 16 << 20), budget))


def _fits_resident(L):
    """Can a full spatial row (even at the minimum 8-row tile) stay resident?"""
    return 8 * L * 4 <= _block_target_bytes()


def _choose_row_tile(R, L, *, block_target=None,
                     min_steps=_MIN_GRID_STEPS, min_block=_MIN_BLOCK_BYTES):
    """Rows per block: ~block_target f32 bytes, multiple of 8, and >= min_steps
    grid steps when that does not shrink blocks below min_block."""
    if block_target is None:
        block_target = _block_target_bytes()
    row_bytes = max(1, L * 4)                       # size in f32-equivalents
    r_pad = _round_up(R, 8)
    rows = max(8, (block_target // row_bytes) // 8 * 8)
    rows = min(rows, r_pad)
    if -(-R // rows) < min_steps:
        rows_steps = max(8, _round_up(-(-R // min_steps), 8))
        rows_minblk = max(8, _round_up(-(-min_block // row_bytes), 8))
        rows = min(rows, min(r_pad, max(rows_steps, rows_minblk)))
    return int(rows)


def _choose_col_tile(L):
    tgt = _block_target_bytes()
    ct = max(128, (tgt // (8 * 4)) // 128 * 128)
    return int(min(ct, _round_up(L, 128)))


# ----------------------------------------------------------------------------
# Kernel 1 (resident rows): per-instance mean / std over the lane axis.
# Two-pass variance inside the resident block; unbiased (/(L-1)) + eps.
# Output packed as (rows, 2): [:, 0] = mean, [:, 1] = std.
# ----------------------------------------------------------------------------
def _moments_resident_kernel(x_ref, ms_ref, *, eps):
    x = x_ref[...].astype(jnp.float32)                          # (TR, L)
    L = x.shape[-1]
    mean = jnp.sum(x, axis=-1, keepdims=True) * jnp.float32(1.0 / L)
    d = x - mean
    var = jnp.sum(d * d, axis=-1, keepdims=True) * jnp.float32(1.0 / (L - 1))
    ms_ref[:, 0:1] = mean
    ms_ref[:, 1:2] = jnp.sqrt(var + jnp.float32(eps))


def _instance_moments_resident(x2d, *, eps, row_tile=None):
    R, L = x2d.shape
    if row_tile is None:
        row_tile = _choose_row_tile(R, L)
    assert row_tile % 8 == 0
    n_blocks = pl.cdiv(R, row_tile)
    itemsize = jnp.dtype(x2d.dtype).itemsize
    need = 2 * row_tile * L * itemsize + 2 * row_tile * L * 4 + 2 * row_tile * 512
    return pl.pallas_call(
        functools.partial(_moments_resident_kernel, eps=eps),
        out_shape=jax.ShapeDtypeStruct((R, 2), jnp.float32),
        grid_spec=pltpu.PrefetchScalarGridSpec(
            num_scalar_prefetch=0,
            grid=(n_blocks,),
            in_specs=[pl.BlockSpec((row_tile, L), lambda i: (i, 0))],
            out_specs=pl.BlockSpec((row_tile, 2), lambda i: (i, 0)),
        ),
        compiler_params=pltpu.CompilerParams(
            dimension_semantics=("parallel",),
            vmem_limit_bytes=_vmem_limit(need),
        ),
    )(x2d)


# ----------------------------------------------------------------------------
# Kernel 1b (column-tiled fallback, very large H*W): accumulate per-row sum and
# sum-of-squares over lane tiles in VMEM scratch, finalize on the last tile.
# (One-pass moments here by necessity; f32 accumulation; only used for huge L.)
# ----------------------------------------------------------------------------
def _moments_coltile_kernel(x_ref, ms_ref, acc_ref, *, eps, L, col_tile):
    j = pl.program_id(1)

    @pl.when(j == 0)
    def _init():
        acc_ref[...] = jnp.zeros_like(acc_ref)

    x = x_ref[...].astype(jnp.float32)                          # (rows, col_tile)
    lane = jax.lax.broadcasted_iota(jnp.int32, x.shape, 1)
    valid = (j * col_tile + lane) < L                           # mask padded lanes
    x = jnp.where(valid, x, 0.0)
    acc_ref[:, 0:1] += jnp.sum(x, axis=-1, keepdims=True)
    acc_ref[:, 1:2] += jnp.sum(x * x, axis=-1, keepdims=True)

    @pl.when(j == pl.num_programs(1) - 1)
    def _finalize():
        s = acc_ref[:, 0:1]
        sq = acc_ref[:, 1:2]
        mean = s * jnp.float32(1.0 / L)
        var = jnp.maximum(sq - s * mean, 0.0) * jnp.float32(1.0 / (L - 1))
        ms_ref[:, 0:1] = mean
        ms_ref[:, 1:2] = jnp.sqrt(var + jnp.float32(eps))


def _instance_moments_coltile(x2d, *, eps, col_tile=None):
    R, L = x2d.shape
    if col_tile is None:
        col_tile = _choose_col_tile(L)
    rows = 8
    n_r = pl.cdiv(R, rows)
    n_c = pl.cdiv(L, col_tile)
    itemsize = jnp.dtype(x2d.dtype).itemsize
    need = 2 * rows * col_tile * itemsize + 3 * rows * col_tile * 4
    return pl.pallas_call(
        functools.partial(_moments_coltile_kernel, eps=eps, L=L, col_tile=col_tile),
        out_shape=jax.ShapeDtypeStruct((R, 2), jnp.float32),
        grid_spec=pltpu.PrefetchScalarGridSpec(
            num_scalar_prefetch=0,
            grid=(n_r, n_c),
            in_specs=[pl.BlockSpec((rows, col_tile), lambda i, j: (i, j))],
            out_specs=pl.BlockSpec((rows, 2), lambda i, j: (i, 0)),
            scratch_shapes=[pltpu.VMEM((rows, 2), jnp.float32)],
        ),
        compiler_params=pltpu.CompilerParams(
            dimension_semantics=("parallel", "arbitrary"),
            vmem_limit_bytes=_vmem_limit(need),
        ),
    )(x2d)


def instance_moments(x2d, *, eps=1e-5):
    """x2d: (R, L) -> (mean, std) vectors of length R (unbiased var + eps)."""
    R, L = x2d.shape
    assert L > 1, "instance variance needs H*W > 1 (unbiased /(L-1))"
    if _fits_resident(L):
        ms = _instance_moments_resident(x2d, eps=eps)
    else:
        ms = _instance_moments_coltile(x2d, eps=eps)
    return ms[:, 0], ms[:, 1]


# ----------------------------------------------------------------------------
# Kernel 2 (fused, main path): content moments + normalize + denormalize in ONE
# HBM pass over x_cont.  gb packs gamma/beta as (rows, 2).
#   inv   = rsqrt(var + eps)           (EUP)
#   scale = gamma * inv
#   shift = beta - mean * scale
#   out   = x * scale + shift
# ----------------------------------------------------------------------------
def _adain_fused_kernel(x_ref, gb_ref, o_ref, *, eps, row_tile, gb_resident):
    if gb_resident:
        r0 = pl.multiple_of(pl.program_id(0) * row_tile, 8)
        gb = gb_ref[pl.ds(r0, row_tile), :]
    else:
        gb = gb_ref[...]
    gamma = gb[:, 0:1]                                          # (TR, 1)
    beta = gb[:, 1:2]                                           # (TR, 1)

    x = x_ref[...].astype(jnp.float32)                          # (TR, L)
    L = x.shape[-1]
    mean = jnp.sum(x, axis=-1, keepdims=True) * jnp.float32(1.0 / L)
    d = x - mean
    var = jnp.sum(d * d, axis=-1, keepdims=True) * jnp.float32(1.0 / (L - 1))
    inv_std = jax.lax.rsqrt(var + jnp.float32(eps))             # EUP, not a divide
    scale = gamma * inv_std
    shift = beta - mean * scale
    o_ref[...] = (x * scale + shift).astype(o_ref.dtype)


def adain_fused_apply(x2d, gb, *, eps=1e-5, row_tile=None):
    R, L = x2d.shape
    assert L > 1, "instance variance needs H*W > 1 (unbiased /(L-1))"
    itemsize = jnp.dtype(x2d.dtype).itemsize
    if row_tile is None:
        row_tile = _choose_row_tile(R, L)
    assert row_tile % 8 == 0
    n_blocks = pl.cdiv(R, row_tile)
    R_pad = n_blocks * row_tile

    # gb: whole-array resident spec (single DMA, pl.ds-sliced per block) when it
    # is small; otherwise a per-block (row_tile, 2) spec.
    gb_resident = (2 * R_pad * 512) <= (2 << 20)
    if gb_resident:
        gb_in = jnp.zeros((R_pad, 2), jnp.float32).at[:R].set(gb.astype(jnp.float32))
        gb_spec = pl.BlockSpec((R_pad, 2), lambda i: (0, 0))
        gb_vmem = 2 * R_pad * 512
    else:
        gb_in = gb.astype(jnp.float32)
        gb_spec = pl.BlockSpec((row_tile, 2), lambda i: (i, 0))
        gb_vmem = 2 * row_tile * 512

    in_blk = row_tile * L * itemsize
    out_blk = row_tile * L * itemsize
    need = 2 * in_blk + 2 * out_blk + 3 * row_tile * L * 4 + gb_vmem

    kernel = functools.partial(_adain_fused_kernel, eps=eps, row_tile=row_tile,
                               gb_resident=gb_resident)
    return pl.pallas_call(
        kernel,
        out_shape=jax.ShapeDtypeStruct((R, L), x2d.dtype),
        grid_spec=pltpu.PrefetchScalarGridSpec(
            num_scalar_prefetch=0,
            grid=(n_blocks,),
            in_specs=[pl.BlockSpec((row_tile, L), lambda i: (i, 0)), gb_spec],
            out_specs=pl.BlockSpec((row_tile, L), lambda i: (i, 0)),
        ),
        compiler_params=pltpu.CompilerParams(
            dimension_semantics=("parallel",),
            vmem_limit_bytes=_vmem_limit(need),
        ),
    )(x2d, gb_in)


# ----------------------------------------------------------------------------
# Kernel 2b (column-tiled fallback apply): out = x * scale + shift, per-row
# scale/shift packed as ss (rows, 2). Used only when a full spatial row cannot
# stay resident (content moments then come from the column-tiled moments kernel).
# ----------------------------------------------------------------------------
def _apply_coltile_kernel(x_ref, ss_ref, o_ref):
    x = x_ref[...].astype(jnp.float32)
    scale = ss_ref[:, 0:1]
    shift = ss_ref[:, 1:2]
    o_ref[...] = (x * scale + shift).astype(o_ref.dtype)


def _adain_apply_coltile(x2d, ss, *, col_tile=None):
    R, L = x2d.shape
    if col_tile is None:
        col_tile = _choose_col_tile(L)
    rows = 8
    n_r = pl.cdiv(R, rows)
    n_c = pl.cdiv(L, col_tile)
    itemsize = jnp.dtype(x2d.dtype).itemsize
    need = 4 * rows * col_tile * itemsize + 2 * rows * col_tile * 4 + 2 * rows * 512
    return pl.pallas_call(
        _apply_coltile_kernel,
        out_shape=jax.ShapeDtypeStruct((R, L), x2d.dtype),
        grid_spec=pltpu.PrefetchScalarGridSpec(
            num_scalar_prefetch=0,
            grid=(n_r, n_c),
            in_specs=[pl.BlockSpec((rows, col_tile), lambda i, j: (i, j)),
                      pl.BlockSpec((rows, 2), lambda i, j: (i, 0))],
            out_specs=pl.BlockSpec((rows, col_tile), lambda i, j: (i, j)),
        ),
        compiler_params=pltpu.CompilerParams(
            dimension_semantics=("parallel", "parallel"),
            vmem_limit_bytes=_vmem_limit(need),
        ),
    )(x2d, ss.astype(jnp.float32))


# ----------------------------------------------------------------------------
# Module wrapper (no learnable parameters; p and eps are hyperparameters).
# ----------------------------------------------------------------------------
def adaptive_instance_normalization(x_cont, x_style=None, *, p=0.5, eps=1e-6,
                                    factor=1.0, key=None):
    """Forward pass of AdaptiveInstanceNormalization.

    x_cont:  (N, C, H, W)  f32 or bf16, NCHW
    x_style: (N, C, Hs, Ws) or None
    Randomness (the np.random branch coin flip and the torch.randn_like noise)
    is reproduced deterministically from `key`.
    """
    if x_style is None:
        return x_cont

    assert x_cont.shape[:2] == x_style.shape[:2]
    if key is None:
        key = jax.random.PRNGKey(0)

    N, C, H, W = x_cont.shape
    _, _, Hs, Ws = x_style.shape
    R = N * C
    Lc = H * W

    x_cont2d = x_cont.reshape(R, Lc)
    x_style2d = x_style.reshape(R, Hs * Ws)

    # Style instance statistics (Pallas). calc_mean_std uses eps=1e-5.
    style_mean_r, style_std_r = instance_moments(x_style2d, eps=1e-5)  # (R,) f32
    style_mean = style_mean_r.reshape(N, C)
    style_std = style_std_r.reshape(N, C)

    # --- small (N, C) glue: sqrtvar + reparameterize (plain JAX) ---
    k_branch, k_mu, k_std = jax.random.split(key, 3)

    def sqrtvar(x):  # unbiased var over batch dim + eps, sqrt, broadcast over N
        t = jnp.sqrt(jnp.var(x, axis=0, ddof=1, keepdims=True) + eps)
        return jnp.broadcast_to(t, x.shape)

    sqrtvar_mu = sqrtvar(style_mean)
    sqrtvar_std = sqrtvar(style_std)
    beta_rep = style_mean + jax.random.normal(k_mu, style_mean.shape) * factor * sqrtvar_mu
    gamma_rep = style_std + jax.random.normal(k_std, style_std.shape) * factor * sqrtvar_std

    # Branch: np.random.random() > p  -> raw style stats; else reparameterized.
    use_style_stats = jax.random.uniform(k_branch, ()) > p
    gamma = jnp.where(use_style_stats, style_std, gamma_rep).reshape(R)
    beta = jnp.where(use_style_stats, style_mean, beta_rep).reshape(R)

    if _fits_resident(Lc):
        # Main path: fused content moments + normalize + denormalize, 1 HBM pass.
        gb = jnp.stack([gamma, beta], axis=1).astype(jnp.float32)      # (R, 2)
        out2d = adain_fused_apply(x_cont2d, gb, eps=1e-5)
    else:
        # Huge H*W fallback: column-tiled moments, then column-tiled apply.
        cmean_r, cstd_r = instance_moments(x_cont2d, eps=1e-5)
        scale = gamma / cstd_r
        shift = beta - cmean_r * scale
        ss = jnp.stack([scale, shift], axis=1).astype(jnp.float32)     # (R, 2)
        out2d = _adain_apply_coltile(x_cont2d, ss)

    return out2d.reshape(N, C, H, W)


# ----------------------------------------------------------------------------
# Pure-JAX reference for verification.
# ----------------------------------------------------------------------------
def _reference(x_cont, x_style, *, p, eps, key):
    N, C, H, W = x_cont.shape

    def calc_mean_std(feat, e=1e-5):
        f = feat.reshape(feat.shape[0], feat.shape[1], -1)
        mean = f.mean(axis=2)
        var = f.var(axis=2, ddof=1) + e
        return mean, jnp.sqrt(var)

    sm, ss = calc_mean_std(x_style)
    cm, cs = calc_mean_std(x_cont)
    x = (x_cont - cm.reshape(N, C, 1, 1)) / cs.reshape(N, C, 1, 1)
    k_branch, k_mu, k_std = jax.random.split(key, 3)

    def sqrtvar(v):
        t = jnp.sqrt(jnp.var(v, axis=0, ddof=1, keepdims=True) + eps)
        return jnp.broadcast_to(t, v.shape)

    beta_rep = sm + jax.random.normal(k_mu, sm.shape) * sqrtvar(sm)
    gamma_rep = ss + jax.random.normal(k_std, ss.shape) * sqrtvar(ss)
    use_style = jax.random.uniform(k_branch, ()) > p
    gamma = jnp.where(use_style, ss, gamma_rep)
    beta = jnp.where(use_style, sm, beta_rep)
    return x * gamma.reshape(N, C, 1, 1) + beta.reshape(N, C, 1, 1)


if __name__ == "__main__":
    key = jax.random.PRNGKey(0)
    kx, ks, kfwd = jax.random.split(key, 3)

    N, C, H, W = 2, 4, 16, 16          # N*C = 8 rows, H*W = 256 lanes
    x_cont = jax.random.normal(kx, (N, C, H, W), dtype=jnp.float32)
    x_style = jax.random.normal(ks, (N, C, H, W), dtype=jnp.float32) * 2.0 + 0.5

    # f32 main (fused) path vs reference.
    out = adaptive_instance_normalization(x_cont, x_style, p=0.5, eps=1e-6, key=kfwd)
    out = jax.block_until_ready(out)
    ref = _reference(x_cont, x_style, p=0.5, eps=1e-6, key=kfwd)
    assert out.shape == x_cont.shape and out.dtype == x_cont.dtype
    assert jnp.allclose(out, ref, atol=1e-4, rtol=1e-4), "f32 mismatch vs reference"

    # bf16 I/O path (f32 accumulation in-kernel).
    out16 = adaptive_instance_normalization(
        x_cont.astype(jnp.bfloat16), x_style.astype(jnp.bfloat16),
        p=0.5, eps=1e-6, key=kfwd)
    out16 = jax.block_until_ready(out16)
    assert out16.dtype == jnp.bfloat16
    assert jnp.allclose(out16.astype(jnp.float32), ref, atol=2e-1, rtol=5e-2), \
        "bf16 mismatch vs reference"

    # Identity path when x_style is None.
    ident = adaptive_instance_normalization(x_cont, None)
    assert jnp.array_equal(ident, x_cont)

    # Exercise the large-H*W column-tiled fallback kernels with a forced small tile.
    R, L = N * C, H * W
    xs2d = x_style.reshape(R, L)
    ms_ct = jax.block_until_ready(_instance_moments_coltile(xs2d, eps=1e-5, col_tile=128))
    ref_mean = xs2d.mean(axis=1)
    ref_std = jnp.sqrt(xs2d.var(axis=1, ddof=1) + 1e-5)
    assert jnp.allclose(ms_ct[:, 0], ref_mean, atol=1e-4, rtol=1e-4), "coltile mean mismatch"
    assert jnp.allclose(ms_ct[:, 1], ref_std, atol=1e-4, rtol=1e-4), "coltile std mismatch"

    xc2d = x_cont.reshape(R, L)
    scale = jnp.linspace(0.5, 2.0, R, dtype=jnp.float32).reshape(R, 1)
    shift = jnp.linspace(-1.0, 1.0, R, dtype=jnp.float32).reshape(R, 1)
    ss = jnp.concatenate([scale, shift], axis=1)
    applied = jax.block_until_ready(_adain_apply_coltile(xc2d, ss, col_tile=128))
    assert jnp.allclose(applied, xc2d * scale + shift, atol=1e-5, rtol=1e-5), \
        "coltile apply mismatch"

    print("KERNEL_OK")
</pallas_src>

<mosaic_0001>
module attributes {stable_mosaic.version = 11 : i64} {
  func.func @_moments_resident_kernel(%arg0: i32, %arg1: memref<8x256xf32, #tpu.memory_space<vmem>>, %arg2: memref<8x2xf32, #tpu.memory_space<vmem>>) attributes {dimension_semantics = [#tpu.dimension_semantics<parallel>], iteration_bounds = array<i64: 1>, scalar_prefetch = 0 : i64, scratch_operands = 0 : i64, tpu.core_type = #tpu.core_type<tc>, window_params = [{transform_indices = @transform_0, window_bounds = array<i64: 8, 256>}, {transform_indices = @transform_1, window_bounds = array<i64: 8, 2>}]} {
    %c0 = arith.constant 0 : index
    %c0_0 = arith.constant 0 : index
    %0 = vector.load %arg1[%c0, %c0_0] : memref<8x256xf32, #tpu.memory_space<vmem>>, vector<8x256xf32>
    %cst = arith.constant dense<0.000000e+00> : vector<8xf32>
    %1 = vector.multi_reduction <add>, %0, %cst [1] : vector<8x256xf32> to vector<8xf32>
    %2 = vector.shape_cast %1 : vector<8xf32> to vector<8x1xf32>
    %cst_1 = arith.constant 3.906250e-03 : f32
    %3 = vector.broadcast %cst_1 : f32 to vector<8x1xf32>
    %4 = arith.mulf %2, %3 : vector<8x1xf32>
    %5 = vector.broadcast %4 : vector<8x1xf32> to vector<8x256xf32>
    %6 = arith.subf %0, %5 : vector<8x256xf32>
    %7 = arith.mulf %6, %6 : vector<8x256xf32>
    %cst_2 = arith.constant dense<0.000000e+00> : vector<8xf32>
    %8 = vector.multi_reduction <add>, %7, %cst_2 [1] : vector<8x256xf32> to vector<8xf32>
    %9 = vector.shape_cast %8 : vector<8xf32> to vector<8x1xf32>
    %cst_3 = arith.constant 0.00392156886 : f32
    %10 = vector.broadcast %cst_3 : f32 to vector<8x1xf32>
    %11 = arith.mulf %9, %10 : vector<8x1xf32>
    %c0_4 = arith.constant 0 : index
    %c0_5 = arith.constant 0 : index
    %12 = vector.load %arg2[%c0_4, %c0_5] : memref<8x2xf32, #tpu.memory_space<vmem>>, vector<8x1xf32>
    tpu.vector_store %arg2[%c0_4, %c0_5], %4 {strides = array<i32>} : memref<8x2xf32, #tpu.memory_space<vmem>>, vector<8x1xf32>,
    %cst_6 = arith.constant 9.99999974E-6 : f32
    %13 = vector.broadcast %cst_6 : f32 to vector<8x1xf32>
    %14 = arith.addf %11, %13 : vector<8x1xf32>
    %15 = math.sqrt %14 : vector<8x1xf32>
    %c0_7 = arith.constant 0 : index
    %c1 = arith.constant 1 : index
    %16 = vector.load %arg2[%c0_7, %c1] : memref<8x2xf32, #tpu.memory_space<vmem>>, vector<8x1xf32>
    tpu.vector_store %arg2[%c0_7, %c1], %15 {strides = array<i32>} : memref<8x2xf32, #tpu.memory_space<vmem>>, vector<8x1xf32>,
    return
  }
  func.func @transform_0(%arg0: i32) -> (i32, i32) {
    %c0_i32 = arith.constant 0 : i32
    %c0_i32_0 = arith.constant 0 : i32
    return %arg0, %c0_i32 : i32, i32
  }
  func.func @transform_1(%arg0: i32) -> (i32, i32) {
    %c0_i32 = arith.constant 0 : i32
    %c0_i32_0 = arith.constant 0 : i32
    return %arg0, %c0_i32 : i32, i32
  }
}

</mosaic_0001>

<llo_original>
// kernel: tpu_custom_call.1
$region0: #{tpu_custom_call.1}
  #allocation0 [shape = 'u32[]', space=smem, size = 0x4, offset = 0x4, fixed_abs, tag = 'smem constant byte address 0x4 - core index']
  #allocation1 [shape = 'u32[144,128]{1,0:T(1,128)}', space=vmem, size = 0x12000, scoped, tag = 'internal scratch']
  %s0 = inlined_call_operand.hbm [shape: f32[8,256], index: 0, kind: input, shape index: {}]
  %s1 = inlined_call_operand.vmem [shape: f32[8,2], index: 1, kind: output, shape index: {}]
  %s2 = sld [smem:[#allocation0]]
  $region18: #{tpu_custom_call.1} parent=0
    _
  %s4 = ssub.s32 1, %s2
  %s5 = scalar_select 0, %s4, %s2
  $region1: #{tpu_custom_call.1} parent=0
    #allocation2 [shape = 'u8[8192]{0}', space=vmem, size = 0x2000, scoped, tag = 'input window, operand 0, single buffered']
    #allocation3 [shape = 's32[1]{0}', space=sflag, size = 0x4, scoped, tag = 'scoped memory for tpu_custom_call.1']
    %6 = vsyncpa [#allocation3], 0
    // Predicated region
    $region2: #{tpu_custom_call.1} parent=1 // pred_check
      _
    $region3: #{tpu_custom_call.1} parent=1 // pred_check_branch
      %8 = sbr.rel (0) target = $region5
    $region4: #{tpu_custom_call.1} parent=1 // pred_region
      %s10 = ssub.s32 256, 256
      %11 = vsyncadd [#allocation3], %s10
      %s13 = sshll.u32 [#allocation2], 4
      %s14 = int_to_ptr.vmem [resolvable:$true] %s13
      %16 = dma.hbm_to_vmem [thread:$0]  %s0, 256, %s14, [#allocation3]
    $region5: #{tpu_custom_call.1} parent=1 // pred_fallthru
      _
    // Predicated region
    $region6: #{tpu_custom_call.1} parent=1 // pred_check
      _
    $region7: #{tpu_custom_call.1} parent=1 // pred_check_branch
      %18 = sbr.rel (0) target = $region9
    $region8: #{tpu_custom_call.1} parent=1 // pred_region
      %19 = dma.done [#allocation3], 256
    $region9: #{tpu_custom_call.1} parent=1 // pred_fallthru
      _
    %v20 = vld [vmem:[#allocation2] sm:$0xff]
    %v21 = vld [vmem:[#allocation2 + $0x8] sm:$0xff]
    %v22 = vadd.f32 %v20, %v21
    %23 = vadd.xlane.f32.xlu0 %v22
    %v24 = vpop.xlane.xlu0 %23
    %v25 = vmul.f32 %v24, 0.00390625
    %v26 = vsub.f32 %v20, %v25
    %v27 = vsub.f32 %v21, %v25
    %v28 = vmul.f32 %v26, %v26
    %v29 = vmul.f32 %v27, %v27
    %v30 = vadd.f32 %v28, %v29
    %31 = vadd.xlane.f32.xlu0 %v30
    %v32 = vpop.xlane.xlu0 %31
    %v33 = vmul.f32 %v32, 0.003921569
    %vm34 = vcmask 7168
    %35 = vst.msk [vmem:[%s1] sm:$0xff] %vm34, %v25
    %v36 = vadd.f32 %v33, 1e-05
    %v37 = vrsqrt.pop %v36
    %v38 = vmul.f32 %v36, %v37
    %vm39 = vcmp.eq.f32.partialorder %v36, inf
    %v40 = vsel %vm39, %v36, %v38
    %vm41 = vcmp.eq.f32.partialorder %v36, 0.0
    %v42 = vand.u32 %v36, 2147483648
    %v43 = vsel %vm41, %v42, %v40
    %vm44 = vcmask 15368
    %45 = vst.msk [vmem:[%s1] sm:$0xff] %vm44, %v43
    // Predicated region
    $region10: #{tpu_custom_call.1} parent=1 // pred_check
      _
    $region11: #{tpu_custom_call.1} parent=1 // pred_check_branch
      %47 = sbr.rel (0) target = $region13
    $region12: #{tpu_custom_call.1} parent=1 // pred_region
      _
    $region13: #{tpu_custom_call.1} parent=1 // pred_fallthru
      _
    // Predicated region
    $region14: #{tpu_custom_call.1} parent=1 // pred_check
      _
    $region15: #{tpu_custom_call.1} parent=1 // pred_check_branch
      %49 = sbr.rel (0) target = $region17
    $region16: #{tpu_custom_call.1} parent=1 // pred_region
      _
    $region17: #{tpu_custom_call.1} parent=1 // pred_fallthru
      _
    %50 = vsyncpa [#allocation3], 1

</llo_original>
